<compile_context>
chip_gen: v7x
topology: tpu7x:2x2x1
jax: 0.10.0
libtpu: 0.0.40
codegen_flags: <defaults>
</compile_context>

<pallas_src>
import jax
import jax.numpy as jnp
from jax import lax
from jax.experimental import pallas as pl
from jax.experimental.pallas import tpu as pltpu

THRESH = 0.5
MARGIN = 0.5
SCALE_POS = 2.0
SCALE_NEG = 40.0
_BIG = 1e16


# ---------------------------------------------------------------------------
# Kernel factory (closes over the real / padded batch sizes)
# ---------------------------------------------------------------------------
def _make_kernel(b_real, b_pad):
    two_bp = 2 * b_pad

    def kernel(q_ref, kT_ref, labc_ref, labr_ref, out_ref):
        i = pl.program_id(0)
        tq = q_ref.shape[0]
        row_start = i * tq                       # tiles never straddle the half boundary
        row_half = (row_start >= b_pad).astype(jnp.int32)   # 0 = cl rows, 1 = cb rows

        # (tq, 2Bp) similarity tile on the MXU; bf16 operands, f32 accumulation.
        sim = lax.dot_general(q_ref[...], kT_ref[...],
                              (((1,), (0,)), ((), ())),
                              preferred_element_type=jnp.float32)
        t = sim - THRESH
        pos_exp = jnp.exp(-SCALE_POS * t)        # one EUP pass per unique sim tile
        neg_exp = jnp.exp(SCALE_NEG * t)

        # label mask: (tq,1) vs (1,2Bp) int32 compare (no float round trip)
        pos_label = labc_ref[...] == labr_ref[...]
        neg_label = jnp.logical_not(pos_label)

        col_idx = lax.broadcasted_iota(jnp.int32, (1, two_bp), 1)
        col_half = (col_idx >= b_pad).astype(jnp.int32)
        same_side = col_half == row_half         # same-domain block (clcl / cbcb)
        cross_side = col_half != row_half        # cross-domain block (cbcl / clcb)
        if b_real != b_pad:                      # mask padded key columns
            col_valid = jnp.logical_or(
                col_idx < b_real,
                jnp.logical_and(col_idx >= b_pad, col_idx < b_pad + b_real))
            same_side = jnp.logical_and(same_side, col_valid)
            cross_side = jnp.logical_and(cross_side, col_valid)

        r_global = row_start + lax.broadcasted_iota(jnp.int32, (tq, 1), 0)
        not_diag = col_idx != r_global           # (tq, 2Bp); diag lives in same-side only

        def ms_rows(pos_m, neg_m):
            # min_P / max_N first, then hard sums straight from sim + masks so the
            # sentinel-filled P/N tensors never stay live (lower vreg/VMEM pressure).
            min_P = jnp.min(jnp.where(pos_m, sim, _BIG), axis=1, keepdims=True)
            max_N = jnp.max(jnp.where(neg_m, sim, -_BIG), axis=1, keepdims=True)
            hard_P = jnp.sum(
                jnp.where(jnp.logical_and(pos_m, sim - MARGIN < max_N), pos_exp, 0.0),
                axis=1, keepdims=True)
            hard_N = jnp.sum(
                jnp.where(jnp.logical_and(neg_m, sim + MARGIN > min_P), neg_exp, 0.0),
                axis=1, keepdims=True)
            return (jnp.log(1.0 + hard_P) / SCALE_POS
                    + jnp.log(1.0 + hard_N) / SCALE_NEG)

        # same-domain block: positives exclude the diagonal; the matrix is symmetric
        # so the transposed direction is identical -> weight 2 (= loss2 or loss3).
        same_rows = ms_rows(
            jnp.logical_and(jnp.logical_and(pos_label, same_side), not_diag),
            jnp.logical_and(neg_label, same_side))
        # cross-domain block: cb rows give ms(sim_cbcl), cl rows give ms(sim_cbcl.T);
        # together they are exactly loss4 (weight 1 each).
        cross_rows = ms_rows(
            jnp.logical_and(pos_label, cross_side),
            jnp.logical_and(neg_label, cross_side))

        out_ref[...] = 2.0 * same_rows + cross_rows

    return kernel


# ---------------------------------------------------------------------------
# Wrapper: glue (l2-norm, stacking, bf16 cast, CE) + tiled pallas_call
# ---------------------------------------------------------------------------
def _l2_normalize(x):
    x = x.astype(jnp.float32)
    normp = jnp.sum(x * x, axis=1, keepdims=True) + 1e-12
    return x / jnp.sqrt(normp)


def dual_ms_loss(x_contactless, x_contactbased, labels,
                 domain_class_cl, domain_class_cb,
                 domain_class_cl_gt, domain_class_cb_gt):
    B, D = x_contactless.shape

    # l2-norm once in f32, stack, cast to bf16; keys pre-transposed once.
    ncl = _l2_normalize(x_contactless)
    ncb = _l2_normalize(x_contactbased)

    b_pad = ((B + 7) // 8) * 8
    if b_pad != B:
        pad = ((0, b_pad - B), (0, 0))
        ncl = jnp.pad(ncl, pad)
        ncb = jnp.pad(ncb, pad)

    q = jnp.concatenate([ncl, ncb], axis=0).astype(jnp.bfloat16)   # (2Bp, D)
    kT = q.T                                                       # (D, 2Bp), resident

    lab = labels.astype(jnp.int32).reshape(-1)
    if b_pad != B:
        lab = jnp.pad(lab, (0, b_pad - B), constant_values=-1)
    lab2 = jnp.concatenate([lab, lab], axis=0)
    two_bp = 2 * b_pad
    lab_col = lab2.reshape(two_bp, 1)
    lab_row = lab2.reshape(1, two_bp)

    # Per-generation VMEM budget and tile height (v7x: 64 MiB, v5e/v6e: 128 MiB).
    try:
        vmem_cap = int(pltpu.get_tpu_info().vmem_capacity_bytes)
    except Exception:
        vmem_cap = 64 << 20
    budget = vmem_cap - (12 << 20)

    tile_cap = 256 if vmem_cap >= (96 << 20) else 128
    tq = min(b_pad, tile_cap)
    while tq > 8 and b_pad % tq != 0:
        tq -= 8
    if b_pad % tq != 0:
        tq = 8

    def _estimate(th):
        return (2 * th * D * 2            # streamed query tile (bf16, double-buffered)
                + 2 * D * two_bp * 2      # resident key operand (bf16, 2 bufs worst-case)
                + 8 * th * two_bp * 4     # sim / exp / mask temporaries (f32)
                + (4 << 20))              # Mosaic internal scratch headroom

    while _estimate(tq) > budget and tq > 8:
        ntq = tq - 8
        while ntq > 8 and b_pad % ntq != 0:
            ntq -= 8
        tq = ntq
    vmem_limit = int(max(32 << 20, min(_estimate(tq), budget)))

    grid = (two_bp // tq,)
    kernel = _make_kernel(B, b_pad)

    row_loss = pl.pallas_call(
        kernel,
        out_shape=jax.ShapeDtypeStruct((two_bp, 1), jnp.float32),
        grid=grid,
        in_specs=[
            pl.BlockSpec((tq, D), lambda i: (i, 0)),        # query row tile (streamed)
            pl.BlockSpec((D, two_bp), lambda i: (0, 0)),    # key operand (resident)
            pl.BlockSpec((tq, 1), lambda i: (i, 0)),        # row labels
            pl.BlockSpec((1, two_bp), lambda i: (0, 0)),    # column labels
        ],
        out_specs=pl.BlockSpec((tq, 1), lambda i: (i, 0)),  # per-row partial loss
        compiler_params=pltpu.CompilerParams(
            dimension_semantics=("parallel",),
            vmem_limit_bytes=vmem_limit,
        ),
    )(q, kT, lab_col, lab_row)

    # Sum only the valid (non-padded) query rows: cl rows then cb rows.
    ms_total = jnp.sum(row_loss[:B, 0]) + jnp.sum(row_loss[b_pad:b_pad + B, 0])

    # Domain-classifier cross-entropy (mean) in the wrapper: C is tiny (e.g. 2),
    # so an in-kernel cross-lane reduce would waste 126/128 lanes.
    pred = jnp.concatenate([domain_class_cl, domain_class_cb], axis=0).astype(jnp.float32)
    gt = jnp.concatenate([domain_class_cl_gt, domain_class_cb_gt], axis=0).astype(jnp.int32)
    logp = jax.nn.log_softmax(pred, axis=-1)
    ce = -jnp.mean(jnp.take_along_axis(logp, gt[:, None], axis=1))

    return ms_total + 3.0 * ce


# ---------------------------------------------------------------------------
# Pure-JAX reference (mirrors the PyTorch code 1:1, all f32) for a sanity check
# ---------------------------------------------------------------------------
def _ref_l2_norm(x):
    return x / jnp.sqrt(jnp.sum(x * x, axis=1, keepdims=True) + 1e-12)


def _ref_ms(sim, labels, exclude_diag):
    pos_exp = jnp.exp(-SCALE_POS * (sim - THRESH))
    neg_exp = jnp.exp(SCALE_NEG * (sim - THRESH))
    lab = labels.astype(jnp.float32)
    pos_mask = ((lab[:, None] - lab[None, :]) == 0.0).astype(jnp.float32)
    if exclude_diag:
        pos_mask = pos_mask + jnp.eye(sim.shape[0], dtype=jnp.float32)
        P = jnp.where(pos_mask == 1, sim, 1e16)
        N = jnp.where(pos_mask == 0, sim, -1e16)
    else:
        neg_mask = 1.0 - pos_mask
        P = jnp.where(pos_mask == 1, sim, 1e16)
        N = jnp.where(neg_mask == 1, sim, -1e16)
    min_P = jnp.min(P, axis=1, keepdims=True)
    max_N = jnp.max(N, axis=1, keepdims=True)
    hard_P = jnp.sum(jnp.where(P - MARGIN < max_N, pos_exp, 0.0), axis=-1)
    hard_N = jnp.sum(jnp.where(N + MARGIN > min_P, neg_exp, 0.0), axis=-1)
    return (jnp.sum(jnp.log(1.0 + hard_P)) / SCALE_POS
            + jnp.sum(jnp.log(1.0 + hard_N)) / SCALE_NEG)


def reference_loss(x_cl, x_cb, labels, dcl, dcb, gcl, gcb):
    ncl = _ref_l2_norm(x_cl)
    ncb = _ref_l2_norm(x_cb)
    s_clcl = ncl @ ncl.T
    s_cbcb = ncb @ ncb.T
    s_cbcl = ncb @ ncl.T
    loss2 = _ref_ms(s_clcl, labels, True) + _ref_ms(s_clcl.T, labels, True)
    loss3 = _ref_ms(s_cbcb, labels, True) + _ref_ms(s_cbcb.T, labels, True)
    loss4 = _ref_ms(s_cbcl, labels, False) + _ref_ms(s_cbcl.T, labels, False)
    pred = jnp.concatenate([dcl, dcb], axis=0)
    gt = jnp.concatenate([gcl, gcb], axis=0)
    logp = jax.nn.log_softmax(pred, axis=-1)
    ce = -jnp.mean(jnp.take_along_axis(logp, gt[:, None], axis=1))
    return loss4 + loss2 + loss3 + 3.0 * ce


if __name__ == "__main__":
    B, D, C = 8, 128, 2   # batch, embedding dim, number of domain classes
    key = jax.random.PRNGKey(0)
    k1, k2, k3, k4, k5 = jax.random.split(key, 5)

    x_contactless = jax.random.normal(k1, (B, D), dtype=jnp.float32)
    x_contactbased = jax.random.normal(k2, (B, D), dtype=jnp.float32)
    labels = jax.random.randint(k3, (B,), 0, 4, dtype=jnp.int32)
    domain_class_cl = jax.random.normal(k4, (B, C), dtype=jnp.float32)
    domain_class_cb = jax.random.normal(k5, (B, C), dtype=jnp.float32)
    domain_class_cl_gt = jnp.zeros((B,), dtype=jnp.int32)
    domain_class_cb_gt = jnp.ones((B,), dtype=jnp.int32)

    loss = dual_ms_loss(x_contactless, x_contactbased, labels,
                        domain_class_cl, domain_class_cb,
                        domain_class_cl_gt, domain_class_cb_gt)
    loss = jax.block_until_ready(loss)

    ref = reference_loss(x_contactless, x_contactbased, labels,
                         domain_class_cl, domain_class_cb,
                         domain_class_cl_gt, domain_class_cb_gt)
    ref = jax.block_until_ready(ref)

    assert jnp.isfinite(loss), "kernel produced non-finite loss"
    # bf16 MXU similarities vs f32 reference -> slightly looser tolerance
    assert jnp.allclose(loss, ref, rtol=2e-2, atol=2e-2), (loss, ref)
    print("KERNEL_OK")
</pallas_src>

<mosaic_0001>
module attributes {stable_mosaic.version = 11 : i64} {
  func.func @kernel(%arg0: i32, %arg1: memref<8x128xbf16, #tpu.memory_space<vmem>>, %arg2: memref<128x16xbf16, #tpu.memory_space<vmem>>, %arg3: memref<8x1xi32, #tpu.memory_space<vmem>>, %arg4: memref<1x16xi32, #tpu.memory_space<vmem>>, %arg5: memref<8x1xf32, #tpu.memory_space<vmem>>) attributes {dimension_semantics = [#tpu.dimension_semantics<parallel>], iteration_bounds = array<i64: 2>, scalar_prefetch = 0 : i64, scratch_operands = 0 : i64, tpu.core_type = #tpu.core_type<tc>, window_params = [{transform_indices = @transform_0, window_bounds = array<i64: 8, 128>}, {pipeline_mode = #tpu.pipeline_mode<synchronous>, transform_indices = @transform_1, window_bounds = array<i64: 128, 16>}, {transform_indices = @transform_2, window_bounds = array<i64: 8, 1>}, {pipeline_mode = #tpu.pipeline_mode<synchronous>, transform_indices = @transform_3, window_bounds = array<i64: 1, 16>}, {transform_indices = @transform_4, window_bounds = array<i64: 8, 1>}]} {
    %c8_i32 = arith.constant 8 : i32
    %0 = arith.muli %arg0, %c8_i32 : i32
    %c8_i32_0 = arith.constant 8 : i32
    %1 = arith.cmpi sge, %0, %c8_i32_0 : i32
    %2 = arith.extui %1 : i1 to i32
    %c0 = arith.constant 0 : index
    %c0_1 = arith.constant 0 : index
    %3 = vector.load %arg1[%c0, %c0_1] : memref<8x128xbf16, #tpu.memory_space<vmem>>, vector<8x128xbf16>
    %c0_2 = arith.constant 0 : index
    %c0_3 = arith.constant 0 : index
    %4 = vector.load %arg2[%c0_2, %c0_3] : memref<128x16xbf16, #tpu.memory_space<vmem>>, vector<128x16xbf16>
    %cst = arith.constant dense<0.000000e+00> : vector<8x16xf32>
    %5 = tpu.matmul %3, %4, %cst {dimension_numbers = #tpu.dot_dimension_numbers<[1], [0], [0], [1], [0, 0, 1, 1], [], []>} : vector<8x128xbf16>, vector<128x16xbf16>, vector<8x16xf32> -> vector<8x16xf32>
    %cst_4 = arith.constant 5.000000e-01 : f32
    %6 = vector.broadcast %cst_4 : f32 to vector<8x16xf32>
    %7 = arith.subf %5, %6 : vector<8x16xf32>
    %cst_5 = arith.constant -2.000000e+00 : f32
    %8 = vector.broadcast %cst_5 : f32 to vector<8x16xf32>
    %9 = arith.mulf %8, %7 : vector<8x16xf32>
    %10 = math.exp %9 : vector<8x16xf32>
    %cst_6 = arith.constant 4.000000e+01 : f32
    %11 = vector.broadcast %cst_6 : f32 to vector<8x16xf32>
    %12 = arith.mulf %11, %7 : vector<8x16xf32>
    %13 = math.exp %12 : vector<8x16xf32>
    %c0_7 = arith.constant 0 : index
    %c0_8 = arith.constant 0 : index
    %14 = vector.load %arg3[%c0_7, %c0_8] : memref<8x1xi32, #tpu.memory_space<vmem>>, vector<8x1xi32>
    %c0_9 = arith.constant 0 : index
    %c0_10 = arith.constant 0 : index
    %15 = vector.load %arg4[%c0_9, %c0_10] : memref<1x16xi32, #tpu.memory_space<vmem>>, vector<1x16xi32>
    %16 = vector.broadcast %14 : vector<8x1xi32> to vector<8x16xi32>
    %17 = vector.broadcast %15 : vector<1x16xi32> to vector<8x16xi32>
    %18 = arith.cmpi eq, %16, %17 : vector<8x16xi32>
    %cst_11 = arith.constant dense<true> : vector<8x16xi1>
    %19 = arith.xori %18, %cst_11 : vector<8x16xi1>
    %20 = tpu.iota {dimensions = array<i32: 1>} : vector<1x16xi32>
    %c8_i32_12 = arith.constant 8 : i32
    %21 = vector.broadcast %c8_i32_12 : i32 to vector<1x16xi32>
    %22 = arith.cmpi sge, %20, %21 : vector<1x16xi32>
    %23 = arith.extui %22 : vector<1x16xi1> to vector<1x16xi32>
    %24 = vector.broadcast %2 : i32 to vector<1x16xi32>
    %25 = arith.cmpi eq, %23, %24 : vector<1x16xi32>
    %26 = vector.broadcast %2 : i32 to vector<1x16xi32>
    %27 = arith.cmpi ne, %23, %26 : vector<1x16xi32>
    %28 = tpu.iota {dimensions = array<i32: 0>} : vector<8x1xi32>
    %29 = vector.broadcast %0 : i32 to vector<8x1xi32>
    %30 = arith.addi %29, %28 : vector<8x1xi32>
    %31 = vector.broadcast %20 : vector<1x16xi32> to vector<8x16xi32>
    %32 = vector.broadcast %30 : vector<8x1xi32> to vector<8x16xi32>
    %33 = arith.cmpi ne, %31, %32 : vector<8x16xi32>
    %34 = vector.broadcast %25 : vector<1x16xi1> to vector<8x16xi1>
    %35 = arith.andi %18, %34 : vector<8x16xi1>
    %36 = arith.andi %35, %33 : vector<8x16xi1>
    %37 = vector.broadcast %25 : vector<1x16xi1> to vector<8x16xi1>
    %38 = arith.andi %19, %37 : vector<8x16xi1>
    %cst_13 = arith.constant 1.000000e+16 : f32
    %39 = vector.broadcast %cst_13 : f32 to vector<8x16xf32>
    %40 = arith.select %36, %5, %39 : vector<8x16xi1>, vector<8x16xf32>
    %cst_14 = arith.constant dense<0x7F800000> : vector<8xf32>
    %41 = vector.multi_reduction <minimumf>, %40, %cst_14 [1] : vector<8x16xf32> to vector<8xf32>
    %42 = vector.shape_cast %41 : vector<8xf32> to vector<8x1xf32>
    %cst_15 = arith.constant -1.000000e+16 : f32
    %43 = vector.broadcast %cst_15 : f32 to vector<8x16xf32>
    %44 = arith.select %38, %5, %43 : vector<8x16xi1>, vector<8x16xf32>
    %cst_16 = arith.constant dense<0xFF800000> : vector<8xf32>
    %45 = vector.multi_reduction <maximumf>, %44, %cst_16 [1] : vector<8x16xf32> to vector<8xf32>
    %46 = vector.shape_cast %45 : vector<8xf32> to vector<8x1xf32>
    %cst_17 = arith.constant 5.000000e-01 : f32
    %47 = vector.broadcast %cst_17 : f32 to vector<8x16xf32>
    %48 = arith.subf %5, %47 : vector<8x16xf32>
    %49 = vector.broadcast %46 : vector<8x1xf32> to vector<8x16xf32>
    %50 = arith.cmpf olt, %48, %49 : vector<8x16xf32>
    %51 = arith.andi %36, %50 : vector<8x16xi1>
    %cst_18 = arith.constant 0.000000e+00 : f32
    %52 = vector.broadcast %cst_18 : f32 to vector<8x16xf32>
    %53 = arith.select %51, %10, %52 : vector<8x16xi1>, vector<8x16xf32>
    %cst_19 = arith.constant dense<0.000000e+00> : vector<8xf32>
    %54 = vector.multi_reduction <add>, %53, %cst_19 [1] : vector<8x16xf32> to vector<8xf32>
    %55 = vector.shape_cast %54 : vector<8xf32> to vector<8x1xf32>
    %cst_20 = arith.constant 5.000000e-01 : f32
    %56 = vector.broadcast %cst_20 : f32 to vector<8x16xf32>
    %57 = arith.addf %5, %56 : vector<8x16xf32>
    %58 = vector.broadcast %42 : vector<8x1xf32> to vector<8x16xf32>
    %59 = arith.cmpf ogt, %57, %58 : vector<8x16xf32>
    %60 = arith.andi %38, %59 : vector<8x16xi1>
    %cst_21 = arith.constant 0.000000e+00 : f32
    %61 = vector.broadcast %cst_21 : f32 to vector<8x16xf32>
    %62 = arith.select %60, %13, %61 : vector<8x16xi1>, vector<8x16xf32>
    %cst_22 = arith.constant dense<0.000000e+00> : vector<8xf32>
    %63 = vector.multi_reduction <add>, %62, %cst_22 [1] : vector<8x16xf32> to vector<8xf32>
    %64 = vector.shape_cast %63 : vector<8xf32> to vector<8x1xf32>
    %cst_23 = arith.constant 1.000000e+00 : f32
    %65 = vector.broadcast %cst_23 : f32 to vector<8x1xf32>
    %66 = arith.addf %65, %55 : vector<8x1xf32>
    %67 = math.log %66 : vector<8x1xf32>
    %cst_24 = arith.constant 2.000000e+00 : f32
    %68 = vector.broadcast %cst_24 : f32 to vector<8x1xf32>
    %69 = arith.divf %67, %68 : vector<8x1xf32>
    %cst_25 = arith.constant 1.000000e+00 : f32
    %70 = vector.broadcast %cst_25 : f32 to vector<8x1xf32>
    %71 = arith.addf %70, %64 : vector<8x1xf32>
    %72 = math.log %71 : vector<8x1xf32>
    %cst_26 = arith.constant 4.000000e+01 : f32
    %73 = vector.broadcast %cst_26 : f32 to vector<8x1xf32>
    %74 = arith.divf %72, %73 : vector<8x1xf32>
    %75 = arith.addf %69, %74 : vector<8x1xf32>
    %76 = vector.broadcast %27 : vector<1x16xi1> to vector<8x16xi1>
    %77 = arith.andi %18, %76 : vector<8x16xi1>
    %78 = vector.broadcast %27 : vector<1x16xi1> to vector<8x16xi1>
    %79 = arith.andi %19, %78 : vector<8x16xi1>
    %cst_27 = arith.constant 1.000000e+16 : f32
    %80 = vector.broadcast %cst_27 : f32 to vector<8x16xf32>
    %81 = arith.select %77, %5, %80 : vector<8x16xi1>, vector<8x16xf32>
    %cst_28 = arith.constant dense<0x7F800000> : vector<8xf32>
    %82 = vector.multi_reduction <minimumf>, %81, %cst_28 [1] : vector<8x16xf32> to vector<8xf32>
    %83 = vector.shape_cast %82 : vector<8xf32> to vector<8x1xf32>
    %cst_29 = arith.constant -1.000000e+16 : f32
    %84 = vector.broadcast %cst_29 : f32 to vector<8x16xf32>
    %85 = arith.select %79, %5, %84 : vector<8x16xi1>, vector<8x16xf32>
    %cst_30 = arith.constant dense<0xFF800000> : vector<8xf32>
    %86 = vector.multi_reduction <maximumf>, %85, %cst_30 [1] : vector<8x16xf32> to vector<8xf32>
    %87 = vector.shape_cast %86 : vector<8xf32> to vector<8x1xf32>
    %cst_31 = arith.constant 5.000000e-01 : f32
    %88 = vector.broadcast %cst_31 : f32 to vector<8x16xf32>
    %89 = arith.subf %5, %88 : vector<8x16xf32>
    %90 = vector.broadcast %87 : vector<8x1xf32> to vector<8x16xf32>
    %91 = arith.cmpf olt, %89, %90 : vector<8x16xf32>
    %92 = arith.andi %77, %91 : vector<8x16xi1>
    %cst_32 = arith.constant 0.000000e+00 : f32
    %93 = vector.broadcast %cst_32 : f32 to vector<8x16xf32>
    %94 = arith.select %92, %10, %93 : vector<8x16xi1>, vector<8x16xf32>
    %cst_33 = arith.constant dense<0.000000e+00> : vector<8xf32>
    %95 = vector.multi_reduction <add>, %94, %cst_33 [1] : vector<8x16xf32> to vector<8xf32>
    %96 = vector.shape_cast %95 : vector<8xf32> to vector<8x1xf32>
    %cst_34 = arith.constant 5.000000e-01 : f32
    %97 = vector.broadcast %cst_34 : f32 to vector<8x16xf32>
    %98 = arith.addf %5, %97 : vector<8x16xf32>
    %99 = vector.broadcast %83 : vector<8x1xf32> to vector<8x16xf32>
    %100 = arith.cmpf ogt, %98, %99 : vector<8x16xf32>
    %101 = arith.andi %79, %100 : vector<8x16xi1>
    %cst_35 = arith.constant 0.000000e+00 : f32
    %102 = vector.broadcast %cst_35 : f32 to vector<8x16xf32>
    %103 = arith.select %101, %13, %102 : vector<8x16xi1>, vector<8x16xf32>
    %cst_36 = arith.constant dense<0.000000e+00> : vector<8xf32>
    %104 = vector.multi_reduction <add>, %103, %cst_36 [1] : vector<8x16xf32> to vector<8xf32>
    %105 = vector.shape_cast %104 : vector<8xf32> to vector<8x1xf32>
    %cst_37 = arith.constant 1.000000e+00 : f32
    %106 = vector.broadcast %cst_37 : f32 to vector<8x1xf32>
    %107 = arith.addf %106, %96 : vector<8x1xf32>
    %108 = math.log %107 : vector<8x1xf32>
    %cst_38 = arith.constant 2.000000e+00 : f32
    %109 = vector.broadcast %cst_38 : f32 to vector<8x1xf32>
    %110 = arith.divf %108, %109 : vector<8x1xf32>
    %cst_39 = arith.constant 1.000000e+00 : f32
    %111 = vector.broadcast %cst_39 : f32 to vector<8x1xf32>
    %112 = arith.addf %111, %105 : vector<8x1xf32>
    %113 = math.log %112 : vector<8x1xf32>
    %cst_40 = arith.constant 4.000000e+01 : f32
    %114 = vector.broadcast %cst_40 : f32 to vector<8x1xf32>
    %115 = arith.divf %113, %114 : vector<8x1xf32>
    %116 = arith.addf %110, %115 : vector<8x1xf32>
    %cst_41 = arith.constant 2.000000e+00 : f32
    %117 = vector.broadcast %cst_41 : f32 to vector<8x1xf32>
    %118 = arith.mulf %117, %75 : vector<8x1xf32>
    %119 = arith.addf %118, %116 : vector<8x1xf32>
    %c0_42 = arith.constant 0 : index
    %c0_43 = arith.constant 0 : index
    %120 = vector.load %arg5[%c0_42, %c0_43] : memref<8x1xf32, #tpu.memory_space<vmem>>, vector<8x1xf32>
    tpu.vector_store %arg5[%c0_42, %c0_43], %119 {strides = array<i32>} : memref<8x1xf32, #tpu.memory_space<vmem>>, vector<8x1xf32>,
    return
  }
  func.func @transform_0(%arg0: i32) -> (i32, i32) {
    %c0_i32 = arith.constant 0 : i32
    %c0_i32_0 = arith.constant 0 : i32
    return %arg0, %c0_i32 : i32, i32
  }
  func.func @transform_1(%arg0: i32) -> (i32, i32) {
    %c0_i32 = arith.constant 0 : i32
    %c0_i32_0 = arith.constant 0 : i32
    %c0_i32_1 = arith.constant 0 : i32
    return %c0_i32, %c0_i32_0 : i32, i32
  }
  func.func @transform_2(%arg0: i32) -> (i32, i32) {
    %c0_i32 = arith.constant 0 : i32
    %c0_i32_0 = arith.constant 0 : i32
    return %arg0, %c0_i32 : i32, i32
  }
  func.func @transform_3(%arg0: i32) -> (i32, i32) {
    %c0_i32 = arith.constant 0 : i32
    %c0_i32_0 = arith.constant 0 : i32
    %c0_i32_1 = arith.constant 0 : i32
    return %c0_i32, %c0_i32_0 : i32, i32
  }
  func.func @transform_4(%arg0: i32) -> (i32, i32) {
    %c0_i32 = arith.constant 0 : i32
    %c0_i32_0 = arith.constant 0 : i32
    return %arg0, %c0_i32 : i32, i32
  }
}

</mosaic_0001>

<llo_original>
// kernel: tpu_custom_call.1
$region0: #{tpu_custom_call.1}
  #allocation0 [shape = 'u32[]', space=smem, size = 0x4, offset = 0x4, fixed_abs, tag = 'smem constant byte address 0x4 - core index']
  #allocation1 [shape = 'u32[144,128]{1,0:T(1,128)}', space=vmem, size = 0x12000, scoped, tag = 'internal scratch']
  %s0 = inlined_call_operand.vmem [shape: bf16[16,128], index: 0, kind: input, shape index: {}]
  %s1 = inlined_call_operand.vmem [shape: bf16[128,16], index: 1, kind: input, shape index: {}]
  %s2 = inlined_call_operand.vmem [shape: s32[16,1], index: 2, kind: input, shape index: {}]
  %s3 = inlined_call_operand.vmem [shape: s32[1,16], index: 3, kind: input, shape index: {}]
  %s4 = inlined_call_operand.vmem [shape: f32[16,1], index: 4, kind: output, shape index: {}]
  %s5 = sld [smem:[#allocation0]]
  $region49: #{tpu_custom_call.1} parent=0
    _
  %s7 = ssub.s32 1, %s5
  %s8 = scalar_select 0, %s7, %s5
  loop: start=0, step=1, limit=4
  $region2: #{tpu_custom_call.1} parent=0 // loop_pre_header
    _
  $region3: #{tpu_custom_call.1} parent=0 // loop_header
    %s10 = sphi 0, %s14
    %p11 = scmp.ge.s32.totalorder %s10, 4
    %s20 = sphi 0, %s22
    %s23 = sphi 0, %s20
    %s24 = sphi 0, %s23
    %s40 = sphi 0, %s24
    %s44 = sphi 0, %s44
    %s46 = sphi 0, %s44
    %s47 = sphi 0, %s46
    %s61 = sphi 0, %s47
    %s67 = sphi 0, %s69
    %s70 = sphi 0, %s67
    %s71 = sphi 0, %s70
    %s87 = sphi 0, %s71
    %s91 = sphi 0, %s91
    %s93 = sphi 0, %s91
    %s94 = sphi 0, %s93
    %s108 = sphi 0, %s94
    %s114 = sphi 0, %s116
    %s117 = sphi 0, %s114
    %s118 = sphi 0, %s117
    %s134 = sphi 0, %s118
  $region4: #{tpu_custom_call.1} parent=0 // loop_header_branch
    %13 = sbr.rel (%p11) target = $region8
  $region5: #{tpu_custom_call.1} parent=0 // loop_body
    %s15 = ssub.s32 %s10, 1
    %s16 = ssub.s32 %s10, 2
    %s17 = sadd.s32 %s10, 1
    %s18 = ssub.s32 %s10, %s17
    %p19 = scmp.eq.s32.totalorder %s18, 0
    %s21 = sadd.s32 %s20, 1
    %s22 = scalar_select %p19, %s20, %s21
    %p25 = pneg %p19
    %p26 = scmp.eq.s32.totalorder %s10, 1
    %p27 = por %p25, %p26
    %p28 = scmp.ne.s32.totalorder %s20, %s23
    %p29 = scmp.eq.s32.totalorder %s10, 0
    %p30 = por %p28, %p29
    %p31 = scmp.ne.s32.totalorder %s20, %s23
    %p32 = scmp.eq.s32.totalorder %s15, 1
    %p33 = por %p31, %p32
    %p34 = scmp.ne.s32.totalorder %s23, %s24
    %p35 = scmp.eq.s32.totalorder %s15, 0
    %p36 = por %p34, %p35
    %p37 = scmp.ne.s32.totalorder %s23, %s24
    %p38 = scmp.eq.s32.totalorder %s16, 1
    %p39 = por %p37, %p38
    %p41 = scmp.ne.s32.totalorder %s24, %s40
    %p42 = scmp.eq.s32.totalorder %s16, 0
    %p43 = por %p41, %p42
    %s45 = sadd.s32 %s44, 1
    %p48 = scmp.eq.s32.totalorder %s10, 1
    %p49 = scmp.ne.s32.totalorder %s44, %s46
    %p50 = scmp.eq.s32.totalorder %s10, 0
    %p51 = por %p49, %p50
    %p52 = scmp.ne.s32.totalorder %s44, %s46
    %p53 = scmp.eq.s32.totalorder %s15, 1
    %p54 = por %p52, %p53
    %p55 = scmp.ne.s32.totalorder %s46, %s47
    %p56 = scmp.eq.s32.totalorder %s15, 0
    %p57 = por %p55, %p56
    %p58 = scmp.ne.s32.totalorder %s46, %s47
    %p59 = scmp.eq.s32.totalorder %s16, 1
    %p60 = por %p58, %p59
    %p62 = scmp.ne.s32.totalorder %s47, %s61
    %p63 = scmp.eq.s32.totalorder %s16, 0
    %p64 = por %p62, %p63
    %s65 = ssub.s32 %s10, %s17
    %p66 = scmp.eq.s32.totalorder %s65, 0
    %s68 = sadd.s32 %s67, 1
    %s69 = scalar_select %p66, %s67, %s68
    %p72 = pneg %p66
    %p73 = scmp.eq.s32.totalorder %s10, 1
    %p74 = por %p72, %p73
    %p75 = scmp.ne.s32.totalorder %s67, %s70
    %p76 = scmp.eq.s32.totalorder %s10, 0
    %p77 = por %p75, %p76
    %p78 = scmp.ne.s32.totalorder %s67, %s70
    %p79 = scmp.eq.s32.totalorder %s15, 1
    %p80 = por %p78, %p79
    %p81 = scmp.ne.s32.totalorder %s70, %s71
    %p82 = scmp.eq.s32.totalorder %s15, 0
    %p83 = por %p81, %p82
    %p84 = scmp.ne.s32.totalorder %s70, %s71
    %p85 = scmp.eq.s32.totalorder %s16, 1
    %p86 = por %p84, %p85
    %p88 = scmp.ne.s32.totalorder %s71, %s87
    %p89 = scmp.eq.s32.totalorder %s16, 0
    %p90 = por %p88, %p89
    %s92 = sadd.s32 %s91, 1
    %p95 = scmp.eq.s32.totalorder %s10, 1
    %p96 = scmp.ne.s32.totalorder %s91, %s93
    %p97 = scmp.eq.s32.totalorder %s10, 0
    %p98 = por %p96, %p97
    %p99 = scmp.ne.s32.totalorder %s91, %s93
    %p100 = scmp.eq.s32.totalorder %s15, 1
    %p101 = por %p99, %p100
    %p102 = scmp.ne.s32.totalorder %s93, %s94
    %p103 = scmp.eq.s32.totalorder %s15, 0
    %p104 = por %p102, %p103
    %p105 = scmp.ne.s32.totalorder %s93, %s94
    %p106 = scmp.eq.s32.totalorder %s16, 1
    %p107 = por %p105, %p106
    %p109 = scmp.ne.s32.totalorder %s94, %s108
    %p110 = scmp.eq.s32.totalorder %s16, 0
    %p111 = por %p109, %p110
    %s112 = ssub.s32 %s10, %s17
    %p113 = scmp.eq.s32.totalorder %s112, 0
    %s115 = sadd.s32 %s114, 1
    %s116 = scalar_select %p113, %s114, %s115
    %p119 = pneg %p113
    %p120 = scmp.eq.s32.totalorder %s10, 1
    %p121 = por %p119, %p120
    %p122 = scmp.ne.s32.totalorder %s114, %s117
    %p123 = scmp.eq.s32.totalorder %s10, 0
    %p124 = por %p122, %p123
    %p125 = scmp.ne.s32.totalorder %s114, %s117
    %p126 = scmp.eq.s32.totalorder %s15, 1
    %p127 = por %p125, %p126
    %p128 = scmp.ne.s32.totalorder %s117, %s118
    %p129 = scmp.eq.s32.totalorder %s15, 0
    %p130 = por %p128, %p129
    %p131 = scmp.ne.s32.totalorder %s117, %s118
    %p132 = scmp.eq.s32.totalorder %s16, 1
    %p133 = por %p131, %p132
    %p135 = scmp.ne.s32.totalorder %s118, %s134
    %p136 = scmp.eq.s32.totalorder %s16, 0
    %p137 = por %p135, %p136
    %p138 = scmp.le.s32.totalorder 1, %s10
    %p139 = scmp.lt.s32.totalorder %s10, 3
    %p140 = pnand %p138, %p139
    %p141 = pneg %p140
    // Predicated region
    $region9: #{tpu_custom_call.1} parent=5 // pred_check
      _
    $region10: #{tpu_custom_call.1} parent=5 // pred_check_branch
      %143 = sbr.rel (%p140) target = $region12
    $region11: #{tpu_custom_call.1} parent=5 // pred_region
      %s144 = ssub.s32 %s10, 1
      // Predicated region
      $region13: #{tpu_custom_call.1} parent=11 // pred_check
        %p145 = pneg %p57
      $region14: #{tpu_custom_call.1} parent=11 // pred_check_branch
        %147 = sbr.rel (%p145) target = $region16
      $region15: #{tpu_custom_call.1} parent=11 // pred_region
        _
      $region16: #{tpu_custom_call.1} parent=11 // pred_fallthru
        _
      // Predicated region
      $region17: #{tpu_custom_call.1} parent=11 // pred_check
        %p148 = pneg %p104
      $region18: #{tpu_custom_call.1} parent=11 // pred_check_branch
        %150 = sbr.rel (%p148) target = $region20
      $region19: #{tpu_custom_call.1} parent=11 // pred_region
        _
      $region20: #{tpu_custom_call.1} parent=11 // pred_fallthru
        _
    $region12: #{tpu_custom_call.1} parent=5 // pred_fallthru
      _
    %p151 = scmp.lt.s32.totalorder %s10, 2
    // Predicated region
    $region21: #{tpu_custom_call.1} parent=5 // pred_check
      %p152 = pneg %p151
    $region22: #{tpu_custom_call.1} parent=5 // pred_check_branch
      %154 = sbr.rel (%p152) target = $region24
    $region23: #{tpu_custom_call.1} parent=5 // pred_region
      // Predicated region
      $region25: #{tpu_custom_call.1} parent=23 // pred_check
        %p155 = pneg %p30
      $region26: #{tpu_custom_call.1} parent=23 // pred_check_branch
        %157 = sbr.rel (%p155) target = $region28
      $region27: #{tpu_custom_call.1} parent=23 // pred_region
        %p158 = scmp.lt.s32.totalorder %s10, 1
        %s159 = scalar_select %p158, %s10, 1
        %s160 = smul.addr %s159, 4
        %s161 = scalar_lea.vmem %s0, %s160
      $region28: #{tpu_custom_call.1} parent=23 // pred_fallthru
        _
      // Predicated region
      $region29: #{tpu_custom_call.1} parent=23 // pred_check
        %p162 = pneg %p77
      $region30: #{tpu_custom_call.1} parent=23 // pred_check_branch
        %164 = sbr.rel (%p162) target = $region32
      $region31: #{tpu_custom_call.1} parent=23 // pred_region
        %p165 = scmp.lt.s32.totalorder %s10, 1
        %s166 = scalar_select %p165, %s10, 1
        %s167 = smul.addr %s166, 8
        %s168 = scalar_lea.vmem %s2, %s167
      $region32: #{tpu_custom_call.1} parent=23 // pred_fallthru
        _
    $region24: #{tpu_custom_call.1} parent=5 // pred_fallthru
      _
    %p169 = scmp.le.s32.totalorder 1, %s10
    %p170 = scmp.lt.s32.totalorder %s10, 3
    %p171 = pnand %p169, %p170
    %p172 = pneg %p171
    // Predicated region
    $region33: #{tpu_custom_call.1} parent=5 // pred_check
      _
    $region34: #{tpu_custom_call.1} parent=5 // pred_check_branch
      %174 = sbr.rel (%p171) target = $region36
    $region35: #{tpu_custom_call.1} parent=5 // pred_region
      %s175 = ssub.s32 %s10, 1
      %p176 = scmp.lt.s32.totalorder %s15, 1
      %s177 = scalar_select %p176, %s15, 1
      %s178 = smul.addr %s177, 4
      %s179 = scalar_lea.vmem %s0, %s178
      %p180 = pneg %p36
      %p181 = pneg %p33
      %p182 = pneg %p57
      %p183 = pneg %p54
      %p184 = scmp.lt.s32.totalorder %s15, 1
      %s185 = scalar_select %p184, %s15, 1
      %s186 = smul.addr %s185, 8
      %s187 = scalar_lea.vmem %s2, %s186
      %p188 = pneg %p83
      %p189 = pneg %p80
      %p190 = pneg %p104
      %p191 = pneg %p101
      %p192 = pneg %p130
      %p193 = pneg %p127
      %p194 = scmp.lt.s32.totalorder %s15, 1
      %s195 = scalar_select %p194, %s15, 1
      %s196 = smul.addr %s195, 8
      %s197 = scalar_lea.vmem %s4, %s196
      %p198 = scmp.lt.s32.totalorder %s15, 1
      %s199 = scalar_select %p198, %s15, 1
      %s200 = smul.addr %s199, 4
      %s201 = scalar_lea.vmem %s0, %s200
      %p202 = scmp.lt.s32.totalorder %s15, 1
      %s203 = scalar_select %p202, %s15, 1
      %s204 = smul.addr %s203, 8
      %s205 = scalar_lea.vmem %s2, %s204
      %p206 = scmp.lt.s32.totalorder %s15, 1
      %s207 = scalar_select %p206, %s15, 1
      %s208 = smul.addr %s207, 8
      %s209 = scalar_lea.vmem %s4, %s208
      %s211 = smul.u32 %s15, 8
      %p212 = scmp.ge.s32.totalorder %s211, 8
      %s213 = scalar_select %p212, 1, 0
      %v214 = vld [vmem:[%s201] sm:$0xf]
      %v215 = vld [vmem:[%s1] sm:$0xf]
      %v216 = vld [vmem:[%s1 + $0x4] sm:$0xf]
      %v217 = vld [vmem:[%s1 + $0x8] sm:$0xf]
      %v218 = vld [vmem:[%s1 + $0xc] sm:$0xf]
      %v219 = vld [vmem:[%s1 + $0x10] sm:$0xf]
      %v220 = vld [vmem:[%s1 + $0x14] sm:$0xf]
      %v221 = vld [vmem:[%s1 + $0x18] sm:$0xf]
      %v222 = vld [vmem:[%s1 + $0x1c] sm:$0xf]
      %v223 = vld [vmem:[%s1 + $0x20] sm:$0xf]
      %v224 = vld [vmem:[%s1 + $0x24] sm:$0xf]
      %v225 = vld [vmem:[%s1 + $0x28] sm:$0xf]
      %v226 = vld [vmem:[%s1 + $0x2c] sm:$0xf]
      %v227 = vld [vmem:[%s1 + $0x30] sm:$0xf]
      %v228 = vld [vmem:[%s1 + $0x34] sm:$0xf]
      %v229 = vld [vmem:[%s1 + $0x38] sm:$0xf]
      %v230 = vld [vmem:[%s1 + $0x3c] sm:$0xf]
      %v247 = vunpack.c.l.b16 %v215
      %v248 = vunpack.c.l.b16 %v216
      %v249 = vunpack.c.l.b16 %v217
      %v250 = vunpack.c.l.b16 %v218
      %v251 = vunpack.c.l.b16 %v219
      %v252 = vunpack.c.l.b16 %v220
      %v253 = vunpack.c.l.b16 %v221
      %v254 = vunpack.c.l.b16 %v222
      %v255 = vunpack.c.l.b16 %v223
      %v256 = vunpack.c.l.b16 %v224
      %v257 = vunpack.c.l.b16 %v225
      %v258 = vunpack.c.l.b16 %v226
      %v259 = vunpack.c.l.b16 %v227
      %v260 = vunpack.c.l.b16 %v228
      %v261 = vunpack.c.l.b16 %v229
      %v262 = vunpack.c.l.b16 %v230
      %v263 = vpack.c.b16 %v248, %v247
      %v264 = vpack.c.b16 %v250, %v249
      %v265 = vpack.c.b16 %v252, %v251
      %v266 = vpack.c.b16 %v254, %v253
      %v267 = vpack.c.b16 %v256, %v255
      %v268 = vpack.c.b16 %v258, %v257
      %v269 = vpack.c.b16 %v260, %v259
      %v270 = vpack.c.b16 %v262, %v261
      %279 = vmatprep.subr.bf16.mxu0 0
      %280 = vmatpush1.bf16.msra.mxu0 %v263
      %281 = vmatprep.subr.bf16.mxu0 0
      %282 = vmatpush1.bf16.msra.mxu0 %v264
      %283 = vmatprep.subr.bf16.mxu0 0
      %284 = vmatpush1.bf16.msra.mxu0 %v265
      %285 = vmatprep.subr.bf16.mxu0 0
      %286 = vmatpush1.bf16.msra.mxu0 %v266
      %287 = vmatprep.subr.bf16.mxu0 0
      %288 = vmatpush1.bf16.msra.mxu0 %v267
      %289 = vmatprep.subr.bf16.mxu0 0
      %290 = vmatpush1.bf16.msra.mxu0 %v268
      %291 = vmatprep.subr.bf16.mxu0 0
      %292 = vmatpush1.bf16.msra.mxu0 %v269
      %293 = vmatprep.subr.bf16.mxu0 0
      %294 = vmatpush1.bf16.msra.mxu0 %v270
      %295 = vmatprep.subr.bf16.mxu0 0
      %296 = vmatpush1.bf16.msra.mxu0 0
      %297 = vmatprep.subr.bf16.mxu0 0
      %298 = vmatpush1.bf16.msra.mxu0 0
      %299 = vmatprep.subr.bf16.mxu0 0
      %300 = vmatpush1.bf16.msra.mxu0 0
      %301 = vmatprep.subr.bf16.mxu0 0
      %302 = vmatpush1.bf16.msra.mxu0 0
      %303 = vmatprep.subr.bf16.mxu0 0
      %304 = vmatpush1.bf16.msra.mxu0 0
      %305 = vmatprep.subr.bf16.mxu0 0
      %306 = vmatpush1.bf16.msra.mxu0 0
      %307 = vmatprep.subr.bf16.mxu0 0
      %308 = vmatpush1.bf16.msra.mxu0 0
      %309 = vmatprep.subr.bf16.mxu0 0
      %310 = vmatpush1.bf16.msra.mxu0 0
      %311 = vmatprep.mubr.bf16.mxu0 0
      %312 = vmatmul.mubr.bf16.gmra.mrb[0].mxu0 %v214
      %v313 = vpop.f32.mrb[0].mxu0
      %v314 = vadd.f32 0.0, %v313
      %v315 = vpop.f32.mrb[0].mxu0
      %v316 = vpop.f32.mrb[0].mxu0
      %v317 = vpop.f32.mrb[0].mxu0
      %318 = vdwg.mxu0
      %v319 = vsub.f32 %v314, 0.5
      %v320 = vmul.f32 %v319, -2.0
      %v321 = vmul.f32 %v320, 1.442695
      %v322 = vpow.pop %v321
      %v323 = vmul.f32 %v319, 40.0
      %v324 = vmul.f32 %v323, 1.442695
      %v325 = vpow.pop %v324
      %v326 = vld [vmem:[%s205] sm:$0xff]
      %v327 = vld [vmem:[%s3] sm:$0x1]
      %328 = vset.pattern.permute.xlu0 0
      %329 = vperm.xlu0 %328, %v326
      %v330 = vpop.permute.xlu0 %329
      %v331 = vlaneseq
      %v332 = vshrl.u32 %v331, 7
      %v333 = vsub.s32 0, %v332
      %v334 = vrot.slane %v327, %v333
      %vm335 = vcmp.eq.s32.totalorder %v330, %v334
      %vm336 = vmxor %vm335, 1
      %v337 = vlaneseq
      %v338 = vand.u32 %v337, 127
      %vm339 = vcmp.ge.s32.totalorder %v338, 8
      %v340 = vsel %vm339, 1, 0
      %v341 = vstv %s213
      %vm342 = vcmp.eq.s32.totalorder %v340, %v341
      %vm343 = vcmp.ne.s32.totalorder %v340, %v341
      %v344 = vlaneseq
      %v345 = vshrl.u32 %v344, 7
      %v346 = vstv %s211
      %v347 = vadd.s32 %v346, %v345
      %vm348 = vcmp.ne.s32.totalorder %v338, %v347
      %v349 = vsel %vm342, 1, 0
      %vm350 = vcmp.eq.s32.totalorder %v349, 1
      %vm351 = vmand %vm335, %vm350
      %vm352 = vmand %vm351, %vm348
      %vm353 = vmand %vm336, %vm350
      %v354 = vsel %vm352, %v314, 1e+16
      %vm355 = vcmask 130048
      %v356 = vsel %vm355, %v354, inf
      %357 = vmin.xlane.f32.xlu0 %v356
      %v358 = vpop.xlane.xlu0 %357
      %v359 = vsel %vm353, %v314, -1e+16
      %v360 = vsel %vm355, %v359, -inf
      %361 = vmax.xlane.f32.xlu0 %v360
      %v362 = vpop.xlane.xlu0 %361
      %vm363 = vcmp.lt.f32.partialorder %v319, %v362
      %vm364 = vmand %vm352, %vm363
      %v365 = vsel %vm364, %v322, 0.0
      %v366 = vsel %vm355, %v365, 0.0
      %367 = vadd.xlane.f32.xlu0 %v366
      %v368 = vpop.xlane.xlu0 %367
      %v369 = vadd.f32 %v314, 0.5
      %vm370 = vcmp.gt.f32.partialorder %v369, %v358
      %vm371 = vmand %vm353, %vm370
      %v372 = vsel %vm371, %v325, 0.0
      %v373 = vsel %vm355, %v372, 0.0
      %374 = vadd.xlane.f32.xlu0 %v373
      %v375 = vpop.xlane.xlu0 %374
      %v376 = vadd.f32 %v368, 1.0
      %v377 = vlog2.pop %v376
      %v378 = vmul.f32 %v377, 0.6931472
      %v379 = vrcp.pop 2.0
      %v380 = vmul.f32 %v378, %v379
      %v381 = vadd.f32 %v375, 1.0
      %v382 = vlog2.pop %v381
      %v383 = vmul.f32 %v382, 0.6931472
      %v384 = vrcp.pop 40.0
      %v385 = vmul.f32 %v383, %v384
      %v386 = vadd.f32 %v380, %v385
      %v387 = vsel %vm343, 1, 0
      %vm388 = vcmp.eq.s32.totalorder %v387, 1
      %vm389 = vmand %vm335, %vm388
      %vm390 = vmand %vm336, %vm388
      %v391 = vsel %vm389, %v314, 1e+16
      %v392 = vsel %vm355, %v391, inf
      %393 = vmin.xlane.f32.xlu0 %v392
      %v394 = vpop.xlane.xlu0 %393
      %v395 = vsel %vm390, %v314, -1e+16
      %v396 = vsel %vm355, %v395, -inf
      %397 = vmax.xlane.f32.xlu0 %v396
      %v398 = vpop.xlane.xlu0 %397
      %vm399 = vcmp.lt.f32.partialorder %v319, %v398
      %vm400 = vmand %vm389, %vm399
      %v401 = vsel %vm400, %v322, 0.0
      %v402 = vsel %vm355, %v401, 0.0
      %403 = vadd.xlane.f32.xlu0 %v402
      %v404 = vpop.xlane.xlu0 %403
      %vm405 = vcmp.gt.f32.partialorder %v369, %v394
      %vm406 = vmand %vm390, %vm405
      %v407 = vsel %vm406, %v325, 0.0
      %v408 = vsel %vm355, %v407, 0.0
      %409 = vadd.xlane.f32.xlu0 %v408
      %v410 = vpop.xlane.xlu0 %409
      %v411 = vadd.f32 %v404, 1.0
      %v412 = vlog2.pop %v411
      %v413 = vmul.f32 %v412, 0.6931472
      %v414 = vmul.f32 %v413, %v379
      %v415 = vadd.f32 %v410, 1.0
      %v416 = vlog2.pop %v415
      %v417 = vmul.f32 %v416, 0.6931472
      %v418 = vmul.f32 %v417, %v384
      %v419 = vadd.f32 %v414, %v418
      %v420 = vmul.f32 %v386, 2.0
      %v421 = vadd.f32 %v420, %v419
      %vm422 = vcmask 7168
      %423 = vst.msk [vmem:[%s209] sm:$0xff] %vm422, %v421
      %p424 = scmp.lt.s32.totalorder %s15, 1
      %s425 = scalar_select %p424, %s15, 1
      %s426 = smul.addr %s425, 8
      %s427 = scalar_lea.vmem %s4, %s426
      // Predicated region
      $region37: #{tpu_custom_call.1} parent=35 // pred_check
        %p428 = pneg %p127
      $region38: #{tpu_custom_call.1} parent=35 // pred_check_branch
        %430 = sbr.rel (%p428) target = $region40
      $region39: #{tpu_custom_call.1} parent=35 // pred_region
        _
      $region40: #{tpu_custom_call.1} parent=35 // pred_fallthru
        _
    $region36: #{tpu_custom_call.1} parent=5 // pred_fallthru
      _
    %p431 = scmp.le.s32.totalorder 2, %s10
    // Predicated region
    $region41: #{tpu_custom_call.1} parent=5 // pred_check
      %p432 = pneg %p431
    $region42: #{tpu_custom_call.1} parent=5 // pred_check_branch
      %434 = sbr.rel (%p432) target = $region44
    $region43: #{tpu_custom_call.1} parent=5 // pred_region
      %s435 = ssub.s32 %s10, 2
      // Predicated region
      $region45: #{tpu_custom_call.1} parent=43 // pred_check
        %p436 = pneg %p133
      $region46: #{tpu_custom_call.1} parent=43 // pred_check_branch
        %438 = sbr.rel (%p436) target = $region48
      $region47: #{tpu_custom_call.1} parent=43 // pred_region
        %p439 = scmp.lt.s32.totalorder %s16, 1
        %s440 = scalar_select %p439, %s16, 1
        %s441 = smul.addr %s440, 8
        %s442 = scalar_lea.vmem %s4, %s441
      $region48: #{tpu_custom_call.1} parent=43 // pred_fallthru
        _
    $region44: #{tpu_custom_call.1} parent=5 // pred_fallthru
      _
  $region6: #{tpu_custom_call.1} parent=0 // loop_footer
    %s14 = sadd.s32 1, %s10
  $region7: #{tpu_custom_call.1} parent=0 // loop_footer_branch
    %9 = sbr.rel target = $region3
  $region8: #{tpu_custom_call.1} parent=0 // loop_exit
    _

</llo_original>
